<compile_context>
chip_gen: v5e
topology: v5e:2x2
jax: 0.10.0
libtpu: 0.0.40
codegen_flags: <defaults>
</compile_context>

<pallas_src>
import jax
import jax.numpy as jnp
from jax.experimental import pallas as pl
from jax.experimental.pallas import tpu as pltpu


# ----------------------------- helpers --------------------------------------

def _round_up(n, m):
    return ((n + m - 1) // m) * m


def _tile_and_pad(dim, base, cap):
    """Pick a tile size (multiple of `base`, at most `cap`) and the padded dim."""
    padded = _round_up(dim, base)
    if padded <= cap:
        return padded, padded          # one tile covers the whole (padded) dim
    return _round_up(dim, cap), cap    # cap is a multiple of base by construction


# ----------------------------- kernels --------------------------------------

def _grn_kernel_single_k(x_ref, w_ref, o_ref):
    # Single K step: no accumulator scratch, no pl.when branches — saves an
    # extra (tm, tn) f32 store+load through the scarce vst/vld slots per tile.
    o_ref[...] = jnp.dot(
        x_ref[...], w_ref[...], preferred_element_type=jnp.float32
    ).astype(o_ref.dtype)


def _grn_kernel_multi_k(x_ref, w_ref, o_ref, acc_ref):
    # x_ref: (tm, tk)   w_ref: (tk, tn)   o_ref / acc_ref: (tm, tn)
    @pl.when(pl.program_id(2) == 0)
    def _init():
        acc_ref[...] = jnp.zeros_like(acc_ref)

    acc_ref[...] += jnp.dot(
        x_ref[...], w_ref[...], preferred_element_type=jnp.float32
    )

    @pl.when(pl.program_id(2) == pl.num_programs(2) - 1)
    def _store():
        o_ref[...] = acc_ref[...].astype(o_ref.dtype)


# ----------------------------- wrapper --------------------------------------

def prepare_grn_weight(linear, *, tn_cap=1024, tk_cap=2048, compute_dtype=None):
    """Transpose / pad / (optionally) cast the (gene_num, tf_num) parameter ONCE.

    Call this at parameter-init time (or whenever the parameter is updated),
    NOT per forward call: the transpose+pad would otherwise materialize two
    full HBM copies of the weight on every call of this weight-bandwidth-bound
    matmul.

    Returns (w_prepared, meta) where w_prepared has shape (T_pad, G_pad) and is
    lane-dense along the gene axis.
    """
    G, T = linear.shape
    T_pad, tk = _tile_and_pad(T, 128, tk_cap)
    G_pad, tn = _tile_and_pad(G, 128, tn_cap)

    w_t = linear.T                                  # (T, G)
    if (T_pad != T) or (G_pad != G):
        w_t = jnp.pad(w_t, ((0, T_pad - T), (0, G_pad - G)))
    if compute_dtype is not None and w_t.dtype != jnp.dtype(compute_dtype):
        w_t = w_t.astype(compute_dtype)             # e.g. bf16: halves HBM stream

    meta = {"gene_num": G, "tf_num": T, "tk": tk, "tn": tn}
    return w_t, meta


def grn_forward_prepared(x, w_prepared, meta, *, tm_cap=256):
    """Forward pass of GeneRegulatroyModel with a pre-prepared weight.

    x:          (batch, tf_num)
    w_prepared: (T_pad, G_pad) from prepare_grn_weight
    returns     (batch, gene_num) float32  ==  x @ linear.T
    """
    B, T = x.shape
    assert T == meta["tf_num"], "tf_num mismatch between x and prepared weight"
    G = meta["gene_num"]
    tk, tn = meta["tk"], meta["tn"]
    T_pad, G_pad = w_prepared.shape
    cdtype = w_prepared.dtype
    bytes_in = jnp.dtype(cdtype).itemsize

    B_pad, tm = _tile_and_pad(B, 8, tm_cap)

    x_p = x.astype(cdtype) if x.dtype != cdtype else x
    if (B_pad != B) or (T_pad != T):
        x_p = jnp.pad(x_p, ((0, B_pad - B), (0, T_pad - T)))

    n_i = B_pad // tm          # batch tiles
    n_j = G_pad // tn          # gene tiles
    n_k = T_pad // tk          # tf (reduction) tiles

    cost = pl.CostEstimate(
        flops=2 * B_pad * T_pad * G_pad,
        transcendentals=0,
        bytes_accessed=(B_pad * T_pad + T_pad * G_pad) * bytes_in
        + B_pad * G_pad * 4,
    )

    if n_k == 1:
        # ---- Fast path: whole reduction in one K step (tf_num <= tk_cap). ----
        # Gene axis OUTERMOST: weight block index (0, j) does not depend on the
        # batch tile i, so the weight tile is fetched once per j and reused
        # across all batch tiles -> full weight streamed from HBM exactly once.
        footprint = 2 * (tm * tk * bytes_in + tk * tn * bytes_in + tm * tn * 4)
        vmem_limit = max(footprint + (2 << 20), 16 << 20)

        out = pl.pallas_call(
            _grn_kernel_single_k,
            out_shape=jax.ShapeDtypeStruct((B_pad, G_pad), jnp.float32),
            grid_spec=pltpu.PrefetchScalarGridSpec(
                num_scalar_prefetch=0,
                grid=(n_j, n_i),
                in_specs=[
                    pl.BlockSpec((tm, tk), lambda j, i: (i, 0)),   # x tile
                    pl.BlockSpec((tk, tn), lambda j, i: (0, j)),   # W^T tile
                ],
                out_specs=pl.BlockSpec((tm, tn), lambda j, i: (i, j)),
            ),
            compiler_params=pltpu.CompilerParams(
                # Outermost (gene) axis is parallel -> megacore shards disjoint
                # gene columns across TensorCores on v7x.
                dimension_semantics=("parallel", "parallel"),
                vmem_limit_bytes=int(vmem_limit),
            ),
            cost_estimate=cost,
        )(x_p, w_prepared)
    else:
        # ---- General path: K-tiled reduction with a gated f32 accumulator. ----
        # Note: with i outermost, each extra batch tile re-streams the weight;
        # acceptable for the (rare) tf_num > tk_cap case.
        footprint = (
            2 * (tm * tk * bytes_in + tk * tn * bytes_in + tm * tn * 4)
            + tm * tn * 4
        )
        vmem_limit = max(footprint + (2 << 20), 16 << 20)

        out = pl.pallas_call(
            _grn_kernel_multi_k,
            out_shape=jax.ShapeDtypeStruct((B_pad, G_pad), jnp.float32),
            grid_spec=pltpu.PrefetchScalarGridSpec(
                num_scalar_prefetch=0,
                grid=(n_i, n_j, n_k),
                in_specs=[
                    pl.BlockSpec((tm, tk), lambda i, j, k: (i, k)),  # x tile
                    pl.BlockSpec((tk, tn), lambda i, j, k: (k, j)),  # W^T tile
                ],
                out_specs=pl.BlockSpec((tm, tn), lambda i, j, k: (i, j)),
                scratch_shapes=[pltpu.VMEM((tm, tn), jnp.float32)],
            ),
            compiler_params=pltpu.CompilerParams(
                dimension_semantics=("parallel", "parallel", "arbitrary"),
                vmem_limit_bytes=int(vmem_limit),
            ),
            cost_estimate=cost,
        )(x_p, w_prepared)

    # Slice off zero-padding (zeros along K contribute nothing to the dot).
    return out[:B, :G]


def grn_forward(x, linear, *, compute_dtype=None,
                tm_cap=256, tn_cap=1024, tk_cap=2048):
    """One-shot convenience wrapper (prepares the weight then runs forward).

    For repeated calls with a fixed parameter, call prepare_grn_weight once
    and reuse the result with grn_forward_prepared.
    """
    w_prepared, meta = prepare_grn_weight(
        linear, tn_cap=tn_cap, tk_cap=tk_cap, compute_dtype=compute_dtype
    )
    return grn_forward_prepared(x, w_prepared, meta, tm_cap=tm_cap)


# ----------------------------- self-test ------------------------------------

if __name__ == "__main__":
    # Deterministic synthetic parameter / input construction
    # (mirrors __init__: init_jacobian = torch.rand(gene_num, tf_num)).
    key = jax.random.PRNGKey(0)
    k_w, k_x = jax.random.split(key)

    batch = 8
    tf_num = 16
    gene_num = 32
    tf_idx = jnp.arange(tf_num)  # indices of TF genes among all genes

    # Parameter: uniform in [0, 1) like torch.rand.
    linear = jax.random.uniform(k_w, (gene_num, tf_num), dtype=jnp.float32)
    # Emulate the gradient-hook structural constraint (zero W[tf_idx[j], j])
    # once, statically (hooks / apply_non_negative are training-time ops,
    # not part of forward).
    linear = linear.at[tf_idx, jnp.arange(tf_num)].set(0.0)
    linear = jnp.clip(linear, 0.0, None)   # apply_non_negative

    x = jax.random.normal(k_x, (batch, tf_num), dtype=jnp.float32)

    # Reference: (linear @ x[:, :, None]).squeeze(-1) == x @ linear.T
    ref = x @ linear.T

    # ---- f32 path (weight prepared once, reused per call) ----
    w_f32, meta_f32 = prepare_grn_weight(linear)
    out = jax.block_until_ready(grn_forward_prepared(x, w_f32, meta_f32))
    assert out.shape == (batch, gene_num)
    assert out.dtype == jnp.float32
    assert jnp.allclose(out, ref, atol=1e-5, rtol=1e-5)

    # ---- bf16-weight path (accuracy trade-off flagged by the perf review) ----
    w_bf16, meta_bf16 = prepare_grn_weight(linear, compute_dtype=jnp.bfloat16)
    out_bf16 = jax.block_until_ready(grn_forward_prepared(x, w_bf16, meta_bf16))
    assert out_bf16.shape == (batch, gene_num)
    assert out_bf16.dtype == jnp.float32
    assert jnp.allclose(out_bf16, ref, atol=1e-1, rtol=5e-2)

    print("KERNEL_OK")
</pallas_src>

<mosaic_0001>
module attributes {stable_mosaic.version = 11 : i64} {
  func.func @_grn_kernel_single_k(%arg0: i32, %arg1: i32, %arg2: memref<8x128xf32, #tpu.memory_space<vmem>>, %arg3: memref<128x128xf32, #tpu.memory_space<vmem>>, %arg4: memref<8x128xf32, #tpu.memory_space<vmem>>) attributes {dimension_semantics = [#tpu.dimension_semantics<parallel>, #tpu.dimension_semantics<parallel>], iteration_bounds = array<i64: 1, 1>, scalar_prefetch = 0 : i64, scratch_operands = 0 : i64, tpu.core_type = #tpu.core_type<tc>, window_params = [{transform_indices = @transform_0, window_bounds = array<i64: 8, 128>}, {transform_indices = @transform_1, window_bounds = array<i64: 128, 128>}, {transform_indices = @transform_2, window_bounds = array<i64: 8, 128>}]} {
    %c0 = arith.constant 0 : index
    %c0_0 = arith.constant 0 : index
    %0 = vector.load %arg2[%c0, %c0_0] : memref<8x128xf32, #tpu.memory_space<vmem>>, vector<8x128xf32>
    %c0_1 = arith.constant 0 : index
    %c0_2 = arith.constant 0 : index
    %1 = vector.load %arg3[%c0_1, %c0_2] : memref<128x128xf32, #tpu.memory_space<vmem>>, vector<128x128xf32>
    %cst = arith.constant dense<0.000000e+00> : vector<8x128xf32>
    %2 = tpu.matmul %0, %1, %cst {dimension_numbers = #tpu.dot_dimension_numbers<[1], [0], [0], [1], [0, 0, 1, 1], [], []>} : vector<8x128xf32>, vector<128x128xf32>, vector<8x128xf32> -> vector<8x128xf32>
    %c0_3 = arith.constant 0 : index
    %c0_4 = arith.constant 0 : index
    %3 = vector.load %arg4[%c0_3, %c0_4] : memref<8x128xf32, #tpu.memory_space<vmem>>, vector<8x128xf32>
    tpu.vector_store %arg4[%c0_3, %c0_4], %2 {strides = array<i32>} : memref<8x128xf32, #tpu.memory_space<vmem>>, vector<8x128xf32>,
    return
  }
  func.func @transform_0(%arg0: i32, %arg1: i32) -> (i32, i32) {
    %c0_i32 = arith.constant 0 : i32
    %c0_i32_0 = arith.constant 0 : i32
    return %arg1, %c0_i32 : i32, i32
  }
  func.func @transform_1(%arg0: i32, %arg1: i32) -> (i32, i32) {
    %c0_i32 = arith.constant 0 : i32
    %c0_i32_0 = arith.constant 0 : i32
    return %c0_i32, %arg0 : i32, i32
  }
  func.func @transform_2(%arg0: i32, %arg1: i32) -> (i32, i32) {
    %c0_i32 = arith.constant 0 : i32
    return %arg1, %arg0 : i32, i32
  }
}

</mosaic_0001>

<llo_original>
// kernel: tpu_custom_call.1
$region0: #{tpu_custom_call.1}
  #allocation0 [shape = 'u32[]', space=smem, size = 0x4, offset = 0x4, fixed_abs, tag = 'smem constant byte address 0x4 - core index']
  #allocation1 [shape = 'u32[72,128]{1,0:T(1,128)}', space=vmem, size = 0x9000, scoped, tag = 'internal scratch']
  %s0 = inlined_call_operand.hbm [shape: f32[8,128], index: 0, kind: input, shape index: {}]
  %s1 = inlined_call_operand.hbm [shape: f32[128,128], index: 1, kind: input, shape index: {}]
  %s2 = inlined_call_operand.hbm [shape: f32[8,128], index: 2, kind: output, shape index: {}]
  %s3 = sld [smem:[#allocation0]]
  $region26: #{tpu_custom_call.1} parent=0
    _
  %s5 = ssub.s32 1, %s3
  %s6 = scalar_select 0, %s5, %s3
  $region1: #{tpu_custom_call.1} parent=0
    #allocation2 [shape = 'u8[4096]{0}', space=vmem, size = 0x1000, scoped, tag = 'input window, operand 0, single buffered']
    #allocation3 [shape = 's32[1]{0}', space=sflag, size = 0x4, scoped, tag = 'scoped memory for tpu_custom_call.1']
    #allocation4 [shape = 's32[1]{0}', space=sflag, size = 0x4, scoped, tag = 'scoped memory for tpu_custom_call.1']
    #allocation5 [shape = 'u8[65536]{0}', space=vmem, size = 0x10000, scoped, tag = 'input window, operand 1, single buffered']
    #allocation6 [shape = 's32[1]{0}', space=sflag, size = 0x4, scoped, tag = 'scoped memory for tpu_custom_call.1']
    #allocation7 [shape = 'u8[4096]{0}', space=vmem, size = 0x1000, scoped, tag = 'output window, operand 0, single buffered']
    %7 = vsyncpa [#allocation3], 0
    %8 = vsyncpa [#allocation6], 0
    %9 = vsyncpa [#allocation4], 0
    // Predicated region
    $region2: #{tpu_custom_call.1} parent=1 // pred_check
      _
    $region3: #{tpu_custom_call.1} parent=1 // pred_check_branch
      %11 = sbr.rel (0) target = $region5
    $region4: #{tpu_custom_call.1} parent=1 // pred_region
      %13 = vsyncadd [#allocation3], 0
      %s15 = sshll.u32 %s0, 4
      %s16 = int_to_ptr.hbm [resolvable:$true] %s15
      %s17 = sshll.u32 [#allocation2], 4
      %s18 = int_to_ptr.vmem [resolvable:$true] %s17
      %20 = dma.hbm_to_vmem [thread:$0]  %s16, 128, %s18, [#allocation3]
    $region5: #{tpu_custom_call.1} parent=1 // pred_fallthru
      _
    // Predicated region
    $region6: #{tpu_custom_call.1} parent=1 // pred_check
      _
    $region7: #{tpu_custom_call.1} parent=1 // pred_check_branch
      %22 = sbr.rel (0) target = $region9
    $region8: #{tpu_custom_call.1} parent=1 // pred_region
      %24 = vsyncadd [#allocation6], 0
      %s25 = sshll.u32 %s1, 4
      %s26 = int_to_ptr.hbm [resolvable:$true] %s25
      %s27 = sshll.u32 [#allocation5], 4
      %s28 = int_to_ptr.vmem [resolvable:$true] %s27
      %33 = dma.hbm_to_vmem [thread:$0]  %s26, 2048, %s28, [#allocation6], 128, 128, 8
    $region9: #{tpu_custom_call.1} parent=1 // pred_fallthru
      _
    // Predicated region
    $region10: #{tpu_custom_call.1} parent=1 // pred_check
      _
    $region11: #{tpu_custom_call.1} parent=1 // pred_check_branch
      %35 = sbr.rel (0) target = $region13
    $region12: #{tpu_custom_call.1} parent=1 // pred_region
      %37 = dma.done [#allocation3], 128
    $region13: #{tpu_custom_call.1} parent=1 // pred_fallthru
      _
    // Predicated region
    $region14: #{tpu_custom_call.1} parent=1 // pred_check
      _
    $region15: #{tpu_custom_call.1} parent=1 // pred_check_branch
      %39 = sbr.rel (0) target = $region17
    $region16: #{tpu_custom_call.1} parent=1 // pred_region
      %41 = dma.done [#allocation6], 2048
    $region17: #{tpu_custom_call.1} parent=1 // pred_fallthru
      _
    %v42 = vld [vmem:[#allocation2] sm:$0xff]
    %v43 = vld [vmem:[#allocation5] sm:$0xff]
    %v44 = vld [vmem:[#allocation5 + $0x8] sm:$0xff]
    %v45 = vld [vmem:[#allocation5 + $0x10] sm:$0xff]
    %v46 = vld [vmem:[#allocation5 + $0x18] sm:$0xff]
    %v47 = vld [vmem:[#allocation5 + $0x20] sm:$0xff]
    %v48 = vld [vmem:[#allocation5 + $0x28] sm:$0xff]
    %v49 = vld [vmem:[#allocation5 + $0x30] sm:$0xff]
    %v50 = vld [vmem:[#allocation5 + $0x38] sm:$0xff]
    %v51 = vld [vmem:[#allocation5 + $0x40] sm:$0xff]
    %v52 = vld [vmem:[#allocation5 + $0x48] sm:$0xff]
    %v53 = vld [vmem:[#allocation5 + $0x50] sm:$0xff]
    %v54 = vld [vmem:[#allocation5 + $0x58] sm:$0xff]
    %v55 = vld [vmem:[#allocation5 + $0x60] sm:$0xff]
    %v56 = vld [vmem:[#allocation5 + $0x68] sm:$0xff]
    %v57 = vld [vmem:[#allocation5 + $0x70] sm:$0xff]
    %v58 = vld [vmem:[#allocation5 + $0x78] sm:$0xff]
    %59 = vmatpush.msra.mxu0 %v58
    %60 = vmatpush.msra.mxu0 %v57
    %61 = vmatpush.msra.mxu0 %v56
    %62 = vmatpush.msra.mxu0 %v55
    %63 = vmatpush.msra.mxu0 %v54
    %64 = vmatpush.msra.mxu0 %v53
    %65 = vmatpush.msra.mxu0 %v52
    %66 = vmatpush.msra.mxu0 %v51
    %67 = vmatpush.msra.mxu0 %v50
    %68 = vmatpush.msra.mxu0 %v49
    %69 = vmatpush.msra.mxu0 %v48
    %70 = vmatpush.msra.mxu0 %v47
    %71 = vmatpush.msra.mxu0 %v46
    %72 = vmatpush.msra.mxu0 %v45
    %73 = vmatpush.msra.mxu0 %v44
    %74 = vmatpush.msra.mxu0 %v43
    %75 = vmatmul.f32.gmra.mxu0 %v42
    %v76 = vpop.f32.mrf.mxu0
    %v77 = vadd.f32 0.0, %v76
    %78 = vdwg.mxu0
    %79 = vst [vmem:[#allocation7] sm:$0xff] %v77
    // Predicated region
    $region18: #{tpu_custom_call.1} parent=1 // pred_check
      _
    $region19: #{tpu_custom_call.1} parent=1 // pred_check_branch
      %81 = sbr.rel (0) target = $region21
    $region20: #{tpu_custom_call.1} parent=1 // pred_region
      %83 = vsyncadd [#allocation4], 0
      %s85 = sshll.u32 [#allocation7], 4
      %s86 = int_to_ptr.vmem [resolvable:$true] %s85
      %s87 = sshll.u32 %s2, 4
      %s88 = int_to_ptr.hbm [resolvable:$true] %s87
      %90 = dma.vmem_to_hbm [thread:$0]  %s86, 128, %s88, [#allocation4]
    $region21: #{tpu_custom_call.1} parent=1 // pred_fallthru
      _
    // Predicated region
    $region22: #{tpu_custom_call.1} parent=1 // pred_check
      _
    $region23: #{tpu_custom_call.1} parent=1 // pred_check_branch
      %92 = sbr.rel (0) target = $region25
    $region24: #{tpu_custom_call.1} parent=1 // pred_region
      %94 = dma.done [#allocation4], 128
    $region25: #{tpu_custom_call.1} parent=1 // pred_fallthru
      _
    %95 = vsyncpa [#allocation3], 1
    %96 = vsyncpa [#allocation6], 1
    %97 = vsyncpa [#allocation4], 1

</llo_original>
